<compile_context>
chip_gen: v6e
topology: v6e:2x2x1
jax: 0.10.0
libtpu: 0.0.40
codegen_flags: <defaults>
</compile_context>

<pallas_src>
import jax
import jax.numpy as jnp
from jax.experimental import pallas as pl
from jax.experimental.pallas import tpu as pltpu


def _proposed_loss_kernel(tt_ref, te_ref, tr_ref, re_ref, out_ref, acc_ref):
    """tt_ref/te_ref: (3, TR, 128) target_transl / transl_err channel planes
       tr_ref/re_ref: (4, TR, 128) target_rot / rot_err channel planes
       out_ref      : (2, 8, 128)  per-slice partial sums (transl, rot)
       acc_ref      : (2, TR, 128) f32 per-lane running sums (VMEM)."""
    step = pl.program_id(1)

    @pl.when(step == 0)
    def _init():
        acc_ref[...] = jnp.zeros_like(acc_ref)

    tt = tt_ref[...].astype(jnp.float32)
    te = te_ref[...].astype(jnp.float32)
    tr = tr_ref[...].astype(jnp.float32)
    re = re_ref[...].astype(jnp.float32)

    # ---------------- translation branch: SmoothL1 (beta = 1.0) ------------
    diff = te - tt
    absd = jnp.abs(diff)
    sl1 = jnp.where(absd < 1.0, 0.5 * diff * diff, absd - 0.5)
    transl_part = sl1[0] + sl1[1] + sl1[2]                        # (TR, 128)

    # ---------------- rotation branch: quaternion distance -----------------
    # d = quatmultiply(conj(target_rot), rot_err); conjugation folded into the
    # sign pattern (no materialized negations).
    r0, r1, r2, r3 = tr[0], tr[1], tr[2], tr[3]
    q0, q1, q2, q3 = re[0], re[1], re[2], re[3]
    d0 = r0 * q0 + r1 * q1 + r2 * q2 + r3 * q3
    d1 = r0 * q1 - r1 * q0 + r2 * q3 - r3 * q2
    d2 = r0 * q2 - r1 * q3 - r2 * q0 + r3 * q1
    d3 = r0 * q3 + r1 * q2 - r2 * q1 - r3 * q0
    vec_norm = jnp.sqrt(d1 * d1 + d2 * d2 + d3 * d3)
    rot_part = 2.0 * jnp.arctan2(vec_norm, jnp.abs(d0))           # (TR, 128)
    # Padded samples are all-zero: SmoothL1(0)=0 and arctan2(0,0)=0.

    # Per-lane accumulation only — no cross-lane reduce on the serial chain.
    acc_ref[0] = acc_ref[0] + transl_part
    acc_ref[1] = acc_ref[1] + rot_part

    @pl.when(step == pl.num_programs(1) - 1)
    def _finalize():
        t = acc_ref[0].reshape(-1, 8, 128)                        # (TR/8, 8, 128)
        r = acc_ref[1].reshape(-1, 8, 128)
        out_ref[0] = jnp.sum(t, axis=0)
        out_ref[1] = jnp.sum(r, axis=0)


def _cdiv(a, b):
    return -(-a // b)


def _round_up(x, m):
    return ((x + m - 1) // m) * m


def proposed_loss(target_transl, target_rot, transl_err, rot_err,
                  rescale_trans=1.0, rescale_rot=1.0, *,
                  num_slices=2, target_steps=16, max_tile_rows=256,
                  store_dtype=None):
    """Pallas equivalent of ProposedLoss.forward.  Returns a dict of scalars."""
    N = target_transl.shape[0]
    dtype = (jnp.result_type(target_transl, target_rot, transl_err, rot_err)
             if store_dtype is None else store_dtype)

    # ---- tiling: batch folded onto (rows, 128) lanes -----------------------
    rows_needed = max(_cdiv(N, 128), 1)
    n_slices = num_slices if rows_needed >= num_slices * 8 else 1
    rows_per_slice = _cdiv(rows_needed, n_slices)
    tile_rows = min(max(_round_up(_cdiv(rows_per_slice, max(target_steps, 1)), 8), 8),
                    _round_up(max_tile_rows, 8))        # <=256 rows => <=~6 MiB VMEM
    steps = _cdiv(rows_per_slice, tile_rows)
    n_pad = n_slices * steps * tile_rows * 128

    def pack(x):
        # TODO(synk): feeding these batch-minor ([D, N]) from the producer would
        # remove this relayout pass (the only remaining extra HBM traffic).
        xp = jnp.pad(x.astype(dtype), ((0, n_pad - N), (0, 0)))     # (n_pad, D)
        return jnp.transpose(xp).reshape(x.shape[1], n_pad // 128, 128)

    def row_map(s, i):
        return (0, s * steps + i, 0)

    partial = pl.pallas_call(
        _proposed_loss_kernel,
        out_shape=jax.ShapeDtypeStruct((n_slices, 2, 8, 128), jnp.float32),
        grid_spec=pltpu.PrefetchScalarGridSpec(
            num_scalar_prefetch=0,
            grid=(n_slices, steps),
            in_specs=[
                pl.BlockSpec((3, tile_rows, 128), row_map),
                pl.BlockSpec((3, tile_rows, 128), row_map),
                pl.BlockSpec((4, tile_rows, 128), row_map),
                pl.BlockSpec((4, tile_rows, 128), row_map),
            ],
            out_specs=pl.BlockSpec((None, 2, 8, 128), lambda s, i: (s, 0, 0, 0)),
            scratch_shapes=[pltpu.VMEM((2, tile_rows, 128), jnp.float32)],
        ),
        compiler_params=pltpu.CompilerParams(
            dimension_semantics=("parallel", "arbitrary")),
    )(pack(target_transl), pack(transl_err), pack(target_rot), pack(rot_err))

    # ---- tiny wrapper epilogue (mean, *100, static rescale branches) -------
    sums = jnp.sum(partial, axis=(0, 2, 3), dtype=jnp.float32)      # (2,)
    inv_n = 1.0 / max(N, 1)
    loss_transl = (sums[0] * (100.0 * inv_n) if rescale_trans != 0.0
                   else jnp.float32(0.0))
    loss_rot = sums[1] * inv_n if rescale_rot != 0.0 else jnp.float32(0.0)
    total = rescale_trans * loss_transl + rescale_rot * loss_rot
    return {"total_loss": total, "transl_loss": loss_transl, "rot_loss": loss_rot}


# ------------------------- pure-JAX reference ------------------------------
def _reference(target_transl, target_rot, transl_err, rot_err,
               rescale_trans=1.0, rescale_rot=1.0):
    diff = transl_err - target_transl
    absd = jnp.abs(diff)
    sl1 = jnp.where(absd < 1.0, 0.5 * diff * diff, absd - 0.5)
    loss_transl = (jnp.mean(jnp.sum(sl1, axis=1)) * 100.0
                   if rescale_trans != 0.0 else 0.0)

    if rescale_rot != 0.0:
        q, r = rot_err, target_rot
        rinv = r * jnp.array([1.0, -1.0, -1.0, -1.0], dtype=r.dtype)
        r0, r1, r2, r3 = rinv[:, 0], rinv[:, 1], rinv[:, 2], rinv[:, 3]
        q0, q1, q2, q3 = q[:, 0], q[:, 1], q[:, 2], q[:, 3]
        d0 = r0 * q0 - r1 * q1 - r2 * q2 - r3 * q3
        d1 = r0 * q1 + r1 * q0 - r2 * q3 + r3 * q2
        d2 = r0 * q2 + r1 * q3 + r2 * q0 - r3 * q1
        d3 = r0 * q3 - r1 * q2 + r2 * q1 + r3 * q0
        dist = 2.0 * jnp.arctan2(jnp.sqrt(d1 * d1 + d2 * d2 + d3 * d3), jnp.abs(d0))
        loss_rot = jnp.mean(dist)
    else:
        loss_rot = 0.0
    return (rescale_trans * loss_transl + rescale_rot * loss_rot,
            loss_transl, loss_rot)


if __name__ == "__main__":
    key = jax.random.PRNGKey(0)

    def rand_unit_quat(k, n):
        q = jax.random.normal(k, (n, 4), dtype=jnp.float32)
        return q / jnp.linalg.norm(q, axis=1, keepdims=True)

    def make_inputs(n):
        k1, k2, k3, k4 = jax.random.split(jax.random.fold_in(key, n), 4)
        return (jax.random.normal(k1, (n, 3), dtype=jnp.float32),
                rand_unit_quat(k3, n),
                jax.random.normal(k2, (n, 3), dtype=jnp.float32),
                rand_unit_quat(k4, n))

    # single tile, padded single tile, and a 2-slice / multi-step grid
    cases = (
        (8, dict()),
        (300, dict()),
        (3000, dict(num_slices=2, target_steps=2, max_tile_rows=8)),
    )
    for n, kw in cases:
        tt, tr, te, re = make_inputs(n)
        losses = proposed_loss(tt, tr, te, re, 1.0, 1.0, **kw)
        jax.block_until_ready(losses["total_loss"])
        ref_total, ref_transl, ref_rot = _reference(tt, tr, te, re, 1.0, 1.0)
        assert jnp.allclose(losses["total_loss"], ref_total, rtol=2e-5, atol=1e-5)
        assert jnp.allclose(losses["transl_loss"], ref_transl, rtol=2e-5, atol=1e-5)
        assert jnp.allclose(losses["rot_loss"], ref_rot, rtol=2e-5, atol=1e-5)

    # zero-rescale branch semantics (static branch, matching the nn.Module)
    tt, tr, te, re = make_inputs(8)
    losses = proposed_loss(tt, tr, te, re, 0.0, 1.0)
    jax.block_until_ready(losses["total_loss"])
    ref_total, ref_transl, ref_rot = _reference(tt, tr, te, re, 0.0, 1.0)
    assert jnp.allclose(losses["transl_loss"], 0.0, atol=1e-6)
    assert jnp.allclose(losses["total_loss"], ref_total, rtol=2e-5, atol=1e-5)
    assert jnp.allclose(losses["rot_loss"], ref_rot, rtol=2e-5, atol=1e-5)

    print("KERNEL_OK")
</pallas_src>

<mosaic_0001>
module attributes {stable_mosaic.version = 11 : i64} {
  func.func @_proposed_loss_kernel(%arg0: i32, %arg1: i32, %arg2: memref<3x8x128xf32, #tpu.memory_space<vmem>>, %arg3: memref<3x8x128xf32, #tpu.memory_space<vmem>>, %arg4: memref<4x8x128xf32, #tpu.memory_space<vmem>>, %arg5: memref<4x8x128xf32, #tpu.memory_space<vmem>>, %arg6: memref<1x2x8x128xf32, #tpu.memory_space<vmem>>, %arg7: memref<2x8x128xf32, #tpu.memory_space<vmem>>) attributes {dimension_semantics = [#tpu.dimension_semantics<parallel>, #tpu.dimension_semantics<arbitrary>], iteration_bounds = array<i64: 1, 1>, scalar_prefetch = 0 : i64, scratch_operands = 1 : i64, tpu.core_type = #tpu.core_type<tc>, window_params = [{transform_indices = @transform_0, window_bounds = array<i64: 3, 8, 128>}, {transform_indices = @transform_1, window_bounds = array<i64: 3, 8, 128>}, {transform_indices = @transform_2, window_bounds = array<i64: 4, 8, 128>}, {transform_indices = @transform_3, window_bounds = array<i64: 4, 8, 128>}, {transform_indices = @transform_4, window_bounds = array<i64: 1, 2, 8, 128>}]} {
    %c0_i32 = arith.constant 0 : i32
    %0 = arith.cmpi eq, %arg1, %c0_i32 : i32
    %1 = arith.extui %0 : i1 to i32
    %c0_i32_0 = arith.constant 0 : i32
    %2 = arith.cmpi ne, %1, %c0_i32_0 : i32
    scf.if %2 {
      %cst_28 = arith.constant 0.000000e+00 : f32
      %94 = vector.broadcast %cst_28 : f32 to vector<2x8x128xf32>
      %c0_29 = arith.constant 0 : index
      %c0_30 = arith.constant 0 : index
      %c0_31 = arith.constant 0 : index
      %95 = vector.load %arg7[%c0_29, %c0_30, %c0_31] : memref<2x8x128xf32, #tpu.memory_space<vmem>>, vector<2x8x128xf32>
      tpu.vector_store %arg7[%c0_29, %c0_30, %c0_31], %94 {strides = array<i32>} : memref<2x8x128xf32, #tpu.memory_space<vmem>>, vector<2x8x128xf32>,
    } else {
    }
    %c0 = arith.constant 0 : index
    %c0_1 = arith.constant 0 : index
    %c0_2 = arith.constant 0 : index
    %3 = vector.load %arg2[%c0, %c0_1, %c0_2] : memref<3x8x128xf32, #tpu.memory_space<vmem>>, vector<3x8x128xf32>
    %c0_3 = arith.constant 0 : index
    %c0_4 = arith.constant 0 : index
    %c0_5 = arith.constant 0 : index
    %4 = vector.load %arg3[%c0_3, %c0_4, %c0_5] : memref<3x8x128xf32, #tpu.memory_space<vmem>>, vector<3x8x128xf32>
    %c0_6 = arith.constant 0 : index
    %c0_7 = arith.constant 0 : index
    %c0_8 = arith.constant 0 : index
    %5 = vector.load %arg4[%c0_6, %c0_7, %c0_8] : memref<4x8x128xf32, #tpu.memory_space<vmem>>, vector<4x8x128xf32>
    %c0_9 = arith.constant 0 : index
    %c0_10 = arith.constant 0 : index
    %c0_11 = arith.constant 0 : index
    %6 = vector.load %arg5[%c0_9, %c0_10, %c0_11] : memref<4x8x128xf32, #tpu.memory_space<vmem>>, vector<4x8x128xf32>
    %7 = arith.subf %4, %3 : vector<3x8x128xf32>
    %8 = math.absf %7 : vector<3x8x128xf32>
    %cst = arith.constant 1.000000e+00 : f32
    %9 = vector.broadcast %cst : f32 to vector<3x8x128xf32>
    %10 = arith.cmpf olt, %8, %9 : vector<3x8x128xf32>
    %cst_12 = arith.constant 5.000000e-01 : f32
    %11 = vector.broadcast %cst_12 : f32 to vector<3x8x128xf32>
    %12 = arith.mulf %11, %7 : vector<3x8x128xf32>
    %13 = arith.mulf %12, %7 : vector<3x8x128xf32>
    %cst_13 = arith.constant 5.000000e-01 : f32
    %14 = vector.broadcast %cst_13 : f32 to vector<3x8x128xf32>
    %15 = arith.subf %8, %14 : vector<3x8x128xf32>
    %16 = arith.select %10, %13, %15 : vector<3x8x128xi1>, vector<3x8x128xf32>
    %17 = vector.extract_strided_slice %16 {offsets = [0, 0, 0], sizes = [1, 8, 128], strides = [1, 1, 1]} : vector<3x8x128xf32> to vector<1x8x128xf32>
    %18 = vector.shape_cast %17 : vector<1x8x128xf32> to vector<8x128xf32>
    %19 = vector.extract_strided_slice %16 {offsets = [1, 0, 0], sizes = [1, 8, 128], strides = [1, 1, 1]} : vector<3x8x128xf32> to vector<1x8x128xf32>
    %20 = vector.shape_cast %19 : vector<1x8x128xf32> to vector<8x128xf32>
    %21 = arith.addf %18, %20 : vector<8x128xf32>
    %22 = vector.extract_strided_slice %16 {offsets = [2, 0, 0], sizes = [1, 8, 128], strides = [1, 1, 1]} : vector<3x8x128xf32> to vector<1x8x128xf32>
    %23 = vector.shape_cast %22 : vector<1x8x128xf32> to vector<8x128xf32>
    %24 = arith.addf %21, %23 : vector<8x128xf32>
    %25 = vector.extract_strided_slice %5 {offsets = [0, 0, 0], sizes = [1, 8, 128], strides = [1, 1, 1]} : vector<4x8x128xf32> to vector<1x8x128xf32>
    %26 = vector.shape_cast %25 : vector<1x8x128xf32> to vector<8x128xf32>
    %27 = vector.extract_strided_slice %5 {offsets = [1, 0, 0], sizes = [1, 8, 128], strides = [1, 1, 1]} : vector<4x8x128xf32> to vector<1x8x128xf32>
    %28 = vector.shape_cast %27 : vector<1x8x128xf32> to vector<8x128xf32>
    %29 = vector.extract_strided_slice %5 {offsets = [2, 0, 0], sizes = [1, 8, 128], strides = [1, 1, 1]} : vector<4x8x128xf32> to vector<1x8x128xf32>
    %30 = vector.shape_cast %29 : vector<1x8x128xf32> to vector<8x128xf32>
    %31 = vector.extract_strided_slice %5 {offsets = [3, 0, 0], sizes = [1, 8, 128], strides = [1, 1, 1]} : vector<4x8x128xf32> to vector<1x8x128xf32>
    %32 = vector.shape_cast %31 : vector<1x8x128xf32> to vector<8x128xf32>
    %33 = vector.extract_strided_slice %6 {offsets = [0, 0, 0], sizes = [1, 8, 128], strides = [1, 1, 1]} : vector<4x8x128xf32> to vector<1x8x128xf32>
    %34 = vector.shape_cast %33 : vector<1x8x128xf32> to vector<8x128xf32>
    %35 = vector.extract_strided_slice %6 {offsets = [1, 0, 0], sizes = [1, 8, 128], strides = [1, 1, 1]} : vector<4x8x128xf32> to vector<1x8x128xf32>
    %36 = vector.shape_cast %35 : vector<1x8x128xf32> to vector<8x128xf32>
    %37 = vector.extract_strided_slice %6 {offsets = [2, 0, 0], sizes = [1, 8, 128], strides = [1, 1, 1]} : vector<4x8x128xf32> to vector<1x8x128xf32>
    %38 = vector.shape_cast %37 : vector<1x8x128xf32> to vector<8x128xf32>
    %39 = vector.extract_strided_slice %6 {offsets = [3, 0, 0], sizes = [1, 8, 128], strides = [1, 1, 1]} : vector<4x8x128xf32> to vector<1x8x128xf32>
    %40 = vector.shape_cast %39 : vector<1x8x128xf32> to vector<8x128xf32>
    %41 = arith.mulf %26, %34 : vector<8x128xf32>
    %42 = arith.mulf %28, %36 : vector<8x128xf32>
    %43 = arith.addf %41, %42 : vector<8x128xf32>
    %44 = arith.mulf %30, %38 : vector<8x128xf32>
    %45 = arith.addf %43, %44 : vector<8x128xf32>
    %46 = arith.mulf %32, %40 : vector<8x128xf32>
    %47 = arith.addf %45, %46 : vector<8x128xf32>
    %48 = arith.mulf %26, %36 : vector<8x128xf32>
    %49 = arith.mulf %28, %34 : vector<8x128xf32>
    %50 = arith.subf %48, %49 : vector<8x128xf32>
    %51 = arith.mulf %30, %40 : vector<8x128xf32>
    %52 = arith.addf %50, %51 : vector<8x128xf32>
    %53 = arith.mulf %32, %38 : vector<8x128xf32>
    %54 = arith.subf %52, %53 : vector<8x128xf32>
    %55 = arith.mulf %26, %38 : vector<8x128xf32>
    %56 = arith.mulf %28, %40 : vector<8x128xf32>
    %57 = arith.subf %55, %56 : vector<8x128xf32>
    %58 = arith.mulf %30, %34 : vector<8x128xf32>
    %59 = arith.subf %57, %58 : vector<8x128xf32>
    %60 = arith.mulf %32, %36 : vector<8x128xf32>
    %61 = arith.addf %59, %60 : vector<8x128xf32>
    %62 = arith.mulf %26, %40 : vector<8x128xf32>
    %63 = arith.mulf %28, %38 : vector<8x128xf32>
    %64 = arith.addf %62, %63 : vector<8x128xf32>
    %65 = arith.mulf %30, %36 : vector<8x128xf32>
    %66 = arith.subf %64, %65 : vector<8x128xf32>
    %67 = arith.mulf %32, %34 : vector<8x128xf32>
    %68 = arith.subf %66, %67 : vector<8x128xf32>
    %69 = arith.mulf %54, %54 : vector<8x128xf32>
    %70 = arith.mulf %61, %61 : vector<8x128xf32>
    %71 = arith.addf %69, %70 : vector<8x128xf32>
    %72 = arith.mulf %68, %68 : vector<8x128xf32>
    %73 = arith.addf %71, %72 : vector<8x128xf32>
    %74 = math.sqrt %73 : vector<8x128xf32>
    %75 = math.absf %47 : vector<8x128xf32>
    %76 = math.atan2 %74, %75 : vector<8x128xf32>
    %cst_14 = arith.constant 2.000000e+00 : f32
    %77 = vector.broadcast %cst_14 : f32 to vector<8x128xf32>
    %78 = arith.mulf %77, %76 : vector<8x128xf32>
    %c0_15 = arith.constant 0 : index
    %c0_16 = arith.constant 0 : index
    %c0_17 = arith.constant 0 : index
    %79 = vector.load %arg7[%c0_15, %c0_16, %c0_17] : memref<2x8x128xf32, #tpu.memory_space<vmem>>, vector<1x8x128xf32>
    %80 = vector.shape_cast %79 : vector<1x8x128xf32> to vector<8x128xf32>
    %81 = arith.addf %80, %24 : vector<8x128xf32>
    %c0_18 = arith.constant 0 : index
    %c0_19 = arith.constant 0 : index
    %c0_20 = arith.constant 0 : index
    %82 = vector.load %arg7[%c0_18, %c0_19, %c0_20] : memref<2x8x128xf32, #tpu.memory_space<vmem>>, vector<1x8x128xf32>
    %83 = vector.shape_cast %82 : vector<1x8x128xf32> to vector<8x128xf32>
    %84 = vector.shape_cast %81 : vector<8x128xf32> to vector<1x8x128xf32>
    tpu.vector_store %arg7[%c0_18, %c0_19, %c0_20], %84 {strides = array<i32>} : memref<2x8x128xf32, #tpu.memory_space<vmem>>, vector<1x8x128xf32>,
    %c1 = arith.constant 1 : index
    %c0_21 = arith.constant 0 : index
    %c0_22 = arith.constant 0 : index
    %85 = vector.load %arg7[%c1, %c0_21, %c0_22] : memref<2x8x128xf32, #tpu.memory_space<vmem>>, vector<1x8x128xf32>
    %86 = vector.shape_cast %85 : vector<1x8x128xf32> to vector<8x128xf32>
    %87 = arith.addf %86, %78 : vector<8x128xf32>
    %c1_23 = arith.constant 1 : index
    %c0_24 = arith.constant 0 : index
    %c0_25 = arith.constant 0 : index
    %88 = vector.load %arg7[%c1_23, %c0_24, %c0_25] : memref<2x8x128xf32, #tpu.memory_space<vmem>>, vector<1x8x128xf32>
    %89 = vector.shape_cast %88 : vector<1x8x128xf32> to vector<8x128xf32>
    %90 = vector.shape_cast %87 : vector<8x128xf32> to vector<1x8x128xf32>
    tpu.vector_store %arg7[%c1_23, %c0_24, %c0_25], %90 {strides = array<i32>} : memref<2x8x128xf32, #tpu.memory_space<vmem>>, vector<1x8x128xf32>,
    %c0_i32_26 = arith.constant 0 : i32
    %91 = arith.cmpi eq, %arg1, %c0_i32_26 : i32
    %92 = arith.extui %91 : i1 to i32
    %c0_i32_27 = arith.constant 0 : i32
    %93 = arith.cmpi ne, %92, %c0_i32_27 : i32
    scf.if %93 {
      %c0_28 = arith.constant 0 : index
      %c0_29 = arith.constant 0 : index
      %c0_30 = arith.constant 0 : index
      %94 = vector.load %arg7[%c0_28, %c0_29, %c0_30] : memref<2x8x128xf32, #tpu.memory_space<vmem>>, vector<1x8x128xf32>
      %95 = vector.shape_cast %94 : vector<1x8x128xf32> to vector<8x128xf32>
      %96 = vector.shape_cast %95 : vector<8x128xf32> to vector<1x8x128xf32>
      %c1_31 = arith.constant 1 : index
      %c0_32 = arith.constant 0 : index
      %c0_33 = arith.constant 0 : index
      %97 = vector.load %arg7[%c1_31, %c0_32, %c0_33] : memref<2x8x128xf32, #tpu.memory_space<vmem>>, vector<1x8x128xf32>
      %98 = vector.shape_cast %97 : vector<1x8x128xf32> to vector<8x128xf32>
      %99 = vector.shape_cast %98 : vector<8x128xf32> to vector<1x8x128xf32>
      %cst_34 = arith.constant dense<0.000000e+00> : vector<8x128xf32>
      %100 = vector.multi_reduction <add>, %96, %cst_34 [0] : vector<1x8x128xf32> to vector<8x128xf32>
      %c0_35 = arith.constant 0 : index
      %c0_36 = arith.constant 0 : index
      %c0_37 = arith.constant 0 : index
      %c0_38 = arith.constant 0 : index
      %101 = vector.load %arg6[%c0_35, %c0_36, %c0_37, %c0_38] : memref<1x2x8x128xf32, #tpu.memory_space<vmem>>, vector<1x1x8x128xf32>
      %102 = vector.shape_cast %101 : vector<1x1x8x128xf32> to vector<8x128xf32>
      %103 = vector.shape_cast %100 : vector<8x128xf32> to vector<1x1x8x128xf32>
      tpu.vector_store %arg6[%c0_35, %c0_36, %c0_37, %c0_38], %103 {strides = array<i32>} : memref<1x2x8x128xf32, #tpu.memory_space<vmem>>, vector<1x1x8x128xf32>,
      %cst_39 = arith.constant dense<0.000000e+00> : vector<8x128xf32>
      %104 = vector.multi_reduction <add>, %99, %cst_39 [0] : vector<1x8x128xf32> to vector<8x128xf32>
      %c0_40 = arith.constant 0 : index
      %c1_41 = arith.constant 1 : index
      %c0_42 = arith.constant 0 : index
      %c0_43 = arith.constant 0 : index
      %105 = vector.load %arg6[%c0_40, %c1_41, %c0_42, %c0_43] : memref<1x2x8x128xf32, #tpu.memory_space<vmem>>, vector<1x1x8x128xf32>
      %106 = vector.shape_cast %105 : vector<1x1x8x128xf32> to vector<8x128xf32>
      %107 = vector.shape_cast %104 : vector<8x128xf32> to vector<1x1x8x128xf32>
      tpu.vector_store %arg6[%c0_40, %c1_41, %c0_42, %c0_43], %107 {strides = array<i32>} : memref<1x2x8x128xf32, #tpu.memory_space<vmem>>, vector<1x1x8x128xf32>,
    } else {
    }
    return
  }
  func.func @transform_0(%arg0: i32, %arg1: i32) -> (i32, i32, i32) {
    %c1_i32 = arith.constant 1 : i32
    %0 = arith.muli %arg0, %c1_i32 : i32
    %1 = arith.addi %0, %arg1 : i32
    %c0_i32 = arith.constant 0 : i32
    %c0_i32_0 = arith.constant 0 : i32
    %c0_i32_1 = arith.constant 0 : i32
    return %c0_i32, %1, %c0_i32_0 : i32, i32, i32
  }
  func.func @transform_1(%arg0: i32, %arg1: i32) -> (i32, i32, i32) {
    %c1_i32 = arith.constant 1 : i32
    %0 = arith.muli %arg0, %c1_i32 : i32
    %1 = arith.addi %0, %arg1 : i32
    %c0_i32 = arith.constant 0 : i32
    %c0_i32_0 = arith.constant 0 : i32
    %c0_i32_1 = arith.constant 0 : i32
    return %c0_i32, %1, %c0_i32_0 : i32, i32, i32
  }
  func.func @transform_2(%arg0: i32, %arg1: i32) -> (i32, i32, i32) {
    %c1_i32 = arith.constant 1 : i32
    %0 = arith.muli %arg0, %c1_i32 : i32
    %1 = arith.addi %0, %arg1 : i32
    %c0_i32 = arith.constant 0 : i32
    %c0_i32_0 = arith.constant 0 : i32
    %c0_i32_1 = arith.constant 0 : i32
    return %c0_i32, %1, %c0_i32_0 : i32, i32, i32
  }
  func.func @transform_3(%arg0: i32, %arg1: i32) -> (i32, i32, i32) {
    %c1_i32 = arith.constant 1 : i32
    %0 = arith.muli %arg0, %c1_i32 : i32
    %1 = arith.addi %0, %arg1 : i32
    %c0_i32 = arith.constant 0 : i32
    %c0_i32_0 = arith.constant 0 : i32
    %c0_i32_1 = arith.constant 0 : i32
    return %c0_i32, %1, %c0_i32_0 : i32, i32, i32
  }
  func.func @transform_4(%arg0: i32, %arg1: i32) -> (i32, i32, i32, i32) {
    %c0_i32 = arith.constant 0 : i32
    %c0_i32_0 = arith.constant 0 : i32
    %c0_i32_1 = arith.constant 0 : i32
    %c0_i32_2 = arith.constant 0 : i32
    return %arg0, %c0_i32, %c0_i32_0, %c0_i32_1 : i32, i32, i32, i32
  }
}

</mosaic_0001>

<llo_original>
// kernel: tpu_custom_call.1
$region0: #{tpu_custom_call.1}
  #allocation0 [shape = 'u32[]', space=smem, size = 0x4, offset = 0x4, fixed_abs, tag = 'smem constant byte address 0x4 - core index']
  #allocation1 [shape = 'u32[144,128]{1,0:T(1,128)}', space=vmem, size = 0x12000, scoped, tag = 'internal scratch']
  #allocation2 [shape = 'f32[2,8,128]{2,1,0:T(8,128)}', space=vmem, size = 0x2000, scoped, tag = 'scratch operand']
  %s0 = inlined_call_operand.hbm [shape: f32[3,8,128], index: 0, kind: input, shape index: {}]
  %s1 = inlined_call_operand.hbm [shape: f32[3,8,128], index: 1, kind: input, shape index: {}]
  %s2 = inlined_call_operand.hbm [shape: f32[4,8,128], index: 2, kind: input, shape index: {}]
  %s3 = inlined_call_operand.hbm [shape: f32[4,8,128], index: 3, kind: input, shape index: {}]
  %s4 = inlined_call_operand.hbm [shape: f32[1,2,8,128], index: 4, kind: output, shape index: {}]
  %s5 = sld [smem:[#allocation0]]
  $region50: #{tpu_custom_call.1} parent=0
    _
  %s7 = ssub.s32 1, %s5
  %s8 = scalar_select 0, %s7, %s5
  $region1: #{tpu_custom_call.1} parent=0
    #allocation3 [shape = 'u8[12288]{0}', space=vmem, size = 0x3000, scoped, tag = 'input window, operand 0, single buffered']
    #allocation4 [shape = 's32[1]{0}', space=sflag, size = 0x4, scoped, tag = 'scoped memory for tpu_custom_call.1']
    #allocation5 [shape = 's32[1]{0}', space=sflag, size = 0x4, scoped, tag = 'scoped memory for tpu_custom_call.1']
    #allocation6 [shape = 'u8[12288]{0}', space=vmem, size = 0x3000, scoped, tag = 'input window, operand 1, single buffered']
    #allocation7 [shape = 's32[1]{0}', space=sflag, size = 0x4, scoped, tag = 'scoped memory for tpu_custom_call.1']
    #allocation8 [shape = 'u8[16384]{0}', space=vmem, size = 0x4000, scoped, tag = 'input window, operand 2, single buffered']
    #allocation9 [shape = 'u8[16384]{0}', space=vmem, size = 0x4000, scoped, tag = 'input window, operand 3, single buffered']
    #allocation10 [shape = 's32[1]{0}', space=sflag, size = 0x4, scoped, tag = 'scoped memory for tpu_custom_call.1']
    #allocation11 [shape = 'u8[8192]{0}', space=vmem, size = 0x2000, scoped, tag = 'output window, operand 0, single buffered']
    %9 = vsyncpa [#allocation4], 0
    %10 = vsyncpa [#allocation7], 0
    %11 = vsyncpa [#allocation10], 0
    %12 = vsyncpa [#allocation5], 0
    // Predicated region
    $region2: #{tpu_custom_call.1} parent=1 // pred_check
      _
    $region3: #{tpu_custom_call.1} parent=1 // pred_check_branch
      %14 = sbr.rel (0) target = $region5
    $region4: #{tpu_custom_call.1} parent=1 // pred_region
      %s15 = sadd.s32 0, 0
      %s17 = ssub.s32 384, 384
      %18 = vsyncadd [#allocation4], %s17
      %s19 = smul.addr %s15, 128
      %s20 = scalar_lea.hbm %s0, %s19
      %s21 = sshll.u32 [#allocation3], 4
      %s22 = int_to_ptr.vmem [resolvable:$true] %s21
      %27 = dma.hbm_to_vmem [thread:$0]  %s20, 384, %s22, [#allocation4], 128, 128, 8
    $region5: #{tpu_custom_call.1} parent=1 // pred_fallthru
      _
    // Predicated region
    $region6: #{tpu_custom_call.1} parent=1 // pred_check
      _
    $region7: #{tpu_custom_call.1} parent=1 // pred_check_branch
      %29 = sbr.rel (0) target = $region9
    $region8: #{tpu_custom_call.1} parent=1 // pred_region
      %s30 = sadd.s32 0, 0
      %s32 = ssub.s32 384, 384
      %33 = vsyncadd [#allocation7], %s32
      %s34 = smul.addr %s30, 128
      %s35 = scalar_lea.hbm %s1, %s34
      %s36 = sshll.u32 [#allocation6], 4
      %s37 = int_to_ptr.vmem [resolvable:$true] %s36
      %42 = dma.hbm_to_vmem [thread:$0]  %s35, 384, %s37, [#allocation7], 128, 128, 8
    $region9: #{tpu_custom_call.1} parent=1 // pred_fallthru
      _
    // Predicated region
    $region10: #{tpu_custom_call.1} parent=1 // pred_check
      _
    $region11: #{tpu_custom_call.1} parent=1 // pred_check_branch
      %44 = sbr.rel (0) target = $region13
    $region12: #{tpu_custom_call.1} parent=1 // pred_region
      %s45 = sadd.s32 0, 0
      %s47 = ssub.s32 512, 512
      %48 = vsyncadd [#allocation7], %s47
      %s49 = smul.addr %s45, 128
      %s50 = scalar_lea.hbm %s2, %s49
      %s51 = sshll.u32 [#allocation8], 4
      %s52 = int_to_ptr.vmem [resolvable:$true] %s51
      %57 = dma.hbm_to_vmem [thread:$0]  %s50, 512, %s52, [#allocation7], 128, 128, 8
    $region13: #{tpu_custom_call.1} parent=1 // pred_fallthru
      _
    // Predicated region
    $region14: #{tpu_custom_call.1} parent=1 // pred_check
      _
    $region15: #{tpu_custom_call.1} parent=1 // pred_check_branch
      %59 = sbr.rel (0) target = $region17
    $region16: #{tpu_custom_call.1} parent=1 // pred_region
      %s60 = sadd.s32 0, 0
      %s62 = ssub.s32 512, 512
      %63 = vsyncadd [#allocation10], %s62
      %s64 = smul.addr %s60, 128
      %s65 = scalar_lea.hbm %s3, %s64
      %s66 = sshll.u32 [#allocation9], 4
      %s67 = int_to_ptr.vmem [resolvable:$true] %s66
      %72 = dma.hbm_to_vmem [thread:$0]  %s65, 512, %s67, [#allocation10], 128, 128, 8
    $region17: #{tpu_custom_call.1} parent=1 // pred_fallthru
      _
    // Predicated region
    $region18: #{tpu_custom_call.1} parent=1 // pred_check
      _
    $region19: #{tpu_custom_call.1} parent=1 // pred_check_branch
      %74 = sbr.rel (0) target = $region21
    $region20: #{tpu_custom_call.1} parent=1 // pred_region
      %75 = dma.done [#allocation4], 384
    $region21: #{tpu_custom_call.1} parent=1 // pred_fallthru
      _
    // Predicated region
    $region22: #{tpu_custom_call.1} parent=1 // pred_check
      _
    $region23: #{tpu_custom_call.1} parent=1 // pred_check_branch
      %77 = sbr.rel (0) target = $region25
    $region24: #{tpu_custom_call.1} parent=1 // pred_region
      %78 = dma.done [#allocation7], 384
    $region25: #{tpu_custom_call.1} parent=1 // pred_fallthru
      _
    // Predicated region
    $region26: #{tpu_custom_call.1} parent=1 // pred_check
      _
    $region27: #{tpu_custom_call.1} parent=1 // pred_check_branch
      %80 = sbr.rel (0) target = $region29
    $region28: #{tpu_custom_call.1} parent=1 // pred_region
      %81 = dma.done [#allocation7], 512
    $region29: #{tpu_custom_call.1} parent=1 // pred_fallthru
      _
    // Predicated region
    $region30: #{tpu_custom_call.1} parent=1 // pred_check
      _
    $region31: #{tpu_custom_call.1} parent=1 // pred_check_branch
      %83 = sbr.rel (0) target = $region33
    $region32: #{tpu_custom_call.1} parent=1 // pred_region
      %84 = dma.done [#allocation10], 512
    $region33: #{tpu_custom_call.1} parent=1 // pred_fallthru
      _
    %s85 = sadd.s32 0, 0
    %s86 = sadd.s32 0, 0
    %s87 = sadd.s32 0, 0
    %s88 = sadd.s32 0, 0
    %p89 = scmp.eq.s32.totalorder 0, 0
    // Predicated region
    $region34: #{tpu_custom_call.1} parent=1 // pred_check
      %p90 = pneg %p89
    $region35: #{tpu_custom_call.1} parent=1 // pred_check_branch
      %92 = sbr.rel (%p90) target = $region37
    $region36: #{tpu_custom_call.1} parent=1 // pred_region
      %93 = vst [vmem:[#allocation2] sm:$0xff] 0.0
      %94 = vst [vmem:[#allocation2 + $0x8] sm:$0xff] 0.0
    $region37: #{tpu_custom_call.1} parent=1 // pred_fallthru
      _
    %v95 = vld [vmem:[#allocation3] sm:$0xff]
    %v96 = vld [vmem:[#allocation3 + $0x8] sm:$0xff]
    %v97 = vld [vmem:[#allocation3 + $0x10] sm:$0xff]
    %v98 = vld [vmem:[#allocation6] sm:$0xff]
    %v99 = vld [vmem:[#allocation6 + $0x8] sm:$0xff]
    %v100 = vld [vmem:[#allocation6 + $0x10] sm:$0xff]
    %v101 = vld [vmem:[#allocation8] sm:$0xff]
    %v102 = vld [vmem:[#allocation8 + $0x8] sm:$0xff]
    %v103 = vld [vmem:[#allocation8 + $0x10] sm:$0xff]
    %v104 = vld [vmem:[#allocation8 + $0x18] sm:$0xff]
    %v105 = vld [vmem:[#allocation9] sm:$0xff]
    %v106 = vld [vmem:[#allocation9 + $0x8] sm:$0xff]
    %v107 = vld [vmem:[#allocation9 + $0x10] sm:$0xff]
    %v108 = vld [vmem:[#allocation9 + $0x18] sm:$0xff]
    %v109 = vsub.f32 %v98, %v95
    %v110 = vsub.f32 %v99, %v96
    %v111 = vsub.f32 %v100, %v97
    %v112 = vand.u32 2147483647, %v109
    %v113 = vand.u32 2147483647, %v110
    %v114 = vand.u32 2147483647, %v111
    %vm115 = vcmp.lt.f32.partialorder %v112, 1.0
    %vm116 = vcmp.lt.f32.partialorder %v113, 1.0
    %vm117 = vcmp.lt.f32.partialorder %v114, 1.0
    %v118 = vmul.f32 %v109, 0.5
    %v119 = vmul.f32 %v110, 0.5
    %v120 = vmul.f32 %v111, 0.5
    %v121 = vmul.f32 %v118, %v109
    %v122 = vmul.f32 %v119, %v110
    %v123 = vmul.f32 %v120, %v111
    %v124 = vsub.f32 %v112, 0.5
    %v125 = vsub.f32 %v113, 0.5
    %v126 = vsub.f32 %v114, 0.5
    %v127 = vsel %vm115, %v121, %v124
    %v128 = vsel %vm116, %v122, %v125
    %v129 = vsel %vm117, %v123, %v126
    %v130 = vadd.f32 %v127, %v128
    %v131 = vadd.f32 %v130, %v129
    %v132 = vmul.f32 %v101, %v105
    %v133 = vmul.f32 %v102, %v106
    %v134 = vadd.f32 %v132, %v133
    %v135 = vmul.f32 %v103, %v107
    %v136 = vadd.f32 %v134, %v135
    %v137 = vmul.f32 %v104, %v108
    %v138 = vadd.f32 %v136, %v137
    %v139 = vmul.f32 %v101, %v106
    %v140 = vmul.f32 %v102, %v105
    %v141 = vsub.f32 %v139, %v140
    %v142 = vmul.f32 %v103, %v108
    %v143 = vadd.f32 %v141, %v142
    %v144 = vmul.f32 %v104, %v107
    %v145 = vsub.f32 %v143, %v144
    %v146 = vmul.f32 %v101, %v107
    %v147 = vmul.f32 %v102, %v108
    %v148 = vsub.f32 %v146, %v147
    %v149 = vmul.f32 %v103, %v105
    %v150 = vsub.f32 %v148, %v149
    %v151 = vmul.f32 %v104, %v106
    %v152 = vadd.f32 %v150, %v151
    %v153 = vmul.f32 %v101, %v108
    %v154 = vmul.f32 %v102, %v107
    %v155 = vadd.f32 %v153, %v154
    %v156 = vmul.f32 %v103, %v106
    %v157 = vsub.f32 %v155, %v156
    %v158 = vmul.f32 %v104, %v105
    %v159 = vsub.f32 %v157, %v158
    %v160 = vmul.f32 %v145, %v145
    %v161 = vmul.f32 %v152, %v152
    %v162 = vadd.f32 %v160, %v161
    %v163 = vmul.f32 %v159, %v159
    %v164 = vadd.f32 %v162, %v163
    %v165 = vrsqrt.pop %v164
    %v166 = vmul.f32 %v164, %v165
    %vm167 = vcmp.eq.f32.partialorder %v164, inf
    %v168 = vsel %vm167, %v164, %v166
    %vm169 = vcmp.eq.f32.partialorder %v164, 0.0
    %v170 = vand.u32 %v164, 2147483648
    %v171 = vsel %vm169, %v170, %v168
    %v172 = vand.u32 2147483647, %v138
    %v173 = vand.u32 2147483647, %v172
    %v174 = vand.u32 2147483647, %v171
    %v175 = vmin.f32 %v173, %v174
    %v176 = vmax.f32 %v173, %v174
    %v177 = vrcp.pop %v176
    %v178 = vmul.f32 %v175, %v177
    %v179 = vmul.f32 %v178, %v178
    %v180 = vmul.f32 0.002785687, %v179
    %v181 = vadd.f32 %v180, -0.015866
    %v182 = vmul.f32 %v181, %v179
    %v183 = vadd.f32 %v182, 0.04247222
    %v184 = vmul.f32 %v183, %v179
    %v185 = vadd.f32 %v184, -0.074975304
    %v186 = vmul.f32 %v185, %v179
    %v187 = vadd.f32 %v186, 0.1064488
    %v188 = vmul.f32 %v187, %v179
    %v189 = vadd.f32 %v188, -0.14207031
    %v190 = vmul.f32 %v189, %v179
    %v191 = vadd.f32 %v190, 0.19993454
    %v192 = vmul.f32 %v191, %v179
    %v193 = vadd.f32 %v192, -0.33333147
    %v194 = vmul.f32 %v193, %v179
    %v195 = vmul.f32 %v194, %v178
    %v196 = vadd.f32 %v195, %v178
    %vm197 = vcmp.gt.f32.partialorder %v174, %v173
    %v198 = vsub.f32 1.5707964, %v196
    %v199 = vsel %vm197, %v198, %v196
    %vm200 = vcmp.lt.f32.partialorder %v172, 0.0
    %v201 = vsub.f32 3.1415927, %v199
    %v202 = vsel %vm200, %v201, %v199
    %vm203 = vcmp.eq.f32.partialorder %v171, 0.0
    %v204 = vsel %vm203, 0.0, %v202
    %vm205 = vcmp.ne.f32.partialorder %v172, %v172
    %vm206 = vcmp.ne.f32.partialorder %v171, %v171
    %vm207 = vmor %vm205, %vm206
    %v208 = vsel %vm207, nan, %v204
    %vm209 = vcmp.lt.f32.partialorder %v172, 0.0
    %v210 = vsel %vm209, 2.3561945, 0.7853982
    %vm211 = vcmp.eq.s32.totalorder %v173, inf
    %vm212 = vcmp.eq.s32.totalorder %v174, inf
    %vm213 = vmand %vm211, %vm212
    %v214 = vsel %vm213, %v210, %v208
    %v215 = vand.u32 2147483647, %v214
    %v216 = vand.u32 %v171, 2147483648
    %v217 = vor.u32 %v215, %v216
    %v218 = vmul.f32 %v217, 2.0
    %v219 = vld [vmem:[#allocation2] sm:$0xff]
    %v220 = vadd.f32 %v219, %v131
    %221 = vst [vmem:[#allocation2] sm:$0xff] %v220
    %s222 = scalar_lea.vmem [#allocation2], 8
    %v223 = vld [vmem:[%s222] sm:$0xff]
    %v224 = vadd.f32 %v223, %v218
    %225 = vst [vmem:[%s222] sm:$0xff] %v224
    // Predicated region
    $region38: #{tpu_custom_call.1} parent=1 // pred_check
      %p226 = pneg %p89
    $region39: #{tpu_custom_call.1} parent=1 // pred_check_branch
      %228 = sbr.rel (%p226) target = $region41
    $region40: #{tpu_custom_call.1} parent=1 // pred_region
      %v229 = vld [vmem:[#allocation2] sm:$0xff]
      %v230 = vld [vmem:[%s222] sm:$0xff]
      %v231 = vadd.f32 %v229, 0.0
      %232 = vst [vmem:[#allocation11] sm:$0xff] %v231
      %v233 = vadd.f32 %v230, 0.0
      %s234 = scalar_lea.vmem [#allocation11], 8
      %235 = vst [vmem:[%s234] sm:$0xff] %v233
    $region41: #{tpu_custom_call.1} parent=1 // pred_fallthru
      _
    // Predicated region
    $region42: #{tpu_custom_call.1} parent=1 // pred_check
      _
    $region43: #{tpu_custom_call.1} parent=1 // pred_check_branch
      %237 = sbr.rel (0) target = $region45
    $region44: #{tpu_custom_call.1} parent=1 // pred_region
      %s239 = ssub.s32 256, 256
      %240 = vsyncadd [#allocation5], %s239
      %s241 = sshll.u32 [#allocation11], 4
      %s242 = int_to_ptr.vmem [resolvable:$true] %s241
      %247 = dma.vmem_to_hbm [thread:$0]  %s242, 256, %s4, [#allocation5], 128, 128, 8
    $region45: #{tpu_custom_call.1} parent=1 // pred_fallthru
      _
    // Predicated region
    $region46: #{tpu_custom_call.1} parent=1 // pred_check
      _
    $region47: #{tpu_custom_call.1} parent=1 // pred_check_branch
      %249 = sbr.rel (0) target = $region49
    $region48: #{tpu_custom_call.1} parent=1 // pred_region
      %250 = dma.done [#allocation5], 256
    $region49: #{tpu_custom_call.1} parent=1 // pred_fallthru
      _
    %251 = vsyncpa [#allocation4], 1
    %252 = vsyncpa [#allocation7], 1
    %253 = vsyncpa [#allocation10], 1
    %254 = vsyncpa [#allocation5], 1

</llo_original>
